<compile_context>
chip_gen: v5e
topology: v5e:2x2
jax: 0.10.0
libtpu: 0.0.40
codegen_flags: <defaults>
</compile_context>

<pallas_src>
import jax
import jax.numpy as jnp
from jax import lax
from jax.experimental import pallas as pl
from jax.experimental.pallas import tpu as pltpu

BN_EPS = 1e-5
LANE = 128
VMEM_LIMIT = 48 * 1024 * 1024  # <= v7x physical VMEM (64 MiB) with headroom


# TODO(synk): nn.GELU() defaults to the exact erf form; we use the tanh approximation
# because tanh lowers natively to the TPU EUP.
def _gelu(x):
    c = 0.7978845608028654  # sqrt(2/pi)
    return 0.5 * x * (1.0 + jnp.tanh(c * (x + 0.044715 * x * x * x)))


def _sigmoid(x):
    # Numerically stable, single tanh on the EUP.
    return 0.5 * (jnp.tanh(0.5 * x) + 1.0)


def _round_up(n, m):
    return ((n + m - 1) // m) * m


def _pick_tile(m, t):
    t = min(t, m)
    if t == m:
        return t
    return max(8, (t // 8) * 8)


def _fold_bn(gamma, beta, mean, var, eps=BN_EPS):
    scale = (gamma / jnp.sqrt(var + eps)).astype(jnp.float32)
    shift = (beta - mean * scale).astype(jnp.float32)
    return scale, shift


def _fold_params(params):
    """Fold all inference BatchNorms into weights/biases and lane-pad to 128."""
    hidden, cin = params["conv1_w"].shape[:2]
    oup = params["conv3_w"].shape[0]
    se = params["se_fc1_w"].shape[0]
    Cp, Hp, Op, Sp = (_round_up(d, LANE) for d in (cin, hidden, oup, se))
    f32 = jnp.float32

    s0, b0 = _fold_bn(params["bn0_gamma"], params["bn0_beta"],
                      params["bn0_mean"], params["bn0_var"])
    s1, b1 = _fold_bn(params["bn1_gamma"], params["bn1_beta"],
                      params["bn1_mean"], params["bn1_var"])
    s2, b2 = _fold_bn(params["bn2_gamma"], params["bn2_beta"],
                      params["bn2_mean"], params["bn2_var"])
    s3, b3 = _fold_bn(params["bn3_gamma"], params["bn3_beta"],
                      params["bn3_mean"], params["bn3_var"])

    w1 = params["conv1_w"][:, :, 0, 0].T.astype(f32)                 # (cin, hidden)
    w1_eff = (s0[:, None] * w1) * s1[None, :]                        # BN0 + BN1 scale folded
    bias1 = b1 + s1 * (b0 @ w1)                                      # BN0 shift pushed through

    w_dw = jnp.transpose(params["dw_w"][:, 0], (1, 2, 0)).astype(f32)  # (3,3,hidden)
    w_dw_eff = w_dw * s2[None, None, :]                              # BN2 scale folded (exact)

    w3_eff = params["conv3_w"][:, :, 0, 0].T.astype(f32) * s3[None, :]  # (hidden, oup), BN3 scale
    wp = params["proj_w"][:, :, 0, 0].T.astype(f32)                     # (cin, oup)
    w_se1 = params["se_fc1_w"].T.astype(f32)                            # (hidden, se)
    w_se2 = params["se_fc2_w"].T.astype(f32)                            # (se, hidden)

    def pad2(a, r, c):
        return jnp.pad(a, ((0, r - a.shape[0]), (0, c - a.shape[1])))

    def pad1(a, n):
        return jnp.pad(a, (0, n - a.shape[0]))

    return dict(
        cin=cin, hidden=hidden, oup=oup, se=se, Cp=Cp, Hp=Hp, Op=Op, Sp=Sp,
        w1=pad2(w1_eff, Cp, Hp).astype(jnp.bfloat16),
        b1=pad1(bias1, Hp).reshape(1, Hp).astype(f32),
        wdw=jnp.pad(w_dw_eff, ((0, 0), (0, 0), (0, Hp - hidden))).astype(f32),
        b2=pad1(b2, Hp).reshape(1, Hp).astype(f32),
        wse1=pad2(w_se1, Hp, Sp).astype(f32),
        wse2=pad2(w_se2, Sp, Hp).astype(f32),
        wcat=jnp.concatenate([pad2(w3_eff, Hp, Op), pad2(wp, Cp, Op)],
                             axis=0).astype(jnp.bfloat16),            # (Hp+Cp, Op)
        b3=pad1(b3, Op).reshape(1, Op).astype(f32),
    )


# -----------------------------------------------------------------------------
# K1: 1x1 conv (stride-2 rows, pre-folded BN0/BN1) -> bias -> GELU, row tiled.
# -----------------------------------------------------------------------------
def _pw_gelu_kernel(x_ref, w_ref, b_ref, o_ref):
    acc = jnp.dot(x_ref[...], w_ref[...], preferred_element_type=jnp.float32)
    o_ref[...] = _gelu(acc + b_ref[...]).astype(o_ref.dtype)


def pw_gelu(x2, w, b, *, tm=512):
    """x2: (M, Cp) bf16.  w: (Cp, Hp) bf16.  b: (1, Hp) f32.  -> (M, Hp) bf16."""
    M, Cp = x2.shape
    Hp = w.shape[1]
    tm = _pick_tile(M, tm)
    flops = 2 * M * Cp * Hp
    bytes_accessed = int(M * Cp * 2 + Cp * Hp * 2 + M * Hp * 2 + Hp * 4)
    return pl.pallas_call(
        _pw_gelu_kernel,
        out_shape=jax.ShapeDtypeStruct((M, Hp), jnp.bfloat16),
        grid=(pl.cdiv(M, tm),),
        in_specs=[
            pl.BlockSpec((tm, Cp), lambda i: (i, 0)),
            pl.BlockSpec((Cp, Hp), lambda i: (0, 0)),
            pl.BlockSpec((1, Hp), lambda i: (0, 0)),
        ],
        out_specs=pl.BlockSpec((tm, Hp), lambda i: (i, 0)),
        compiler_params=pltpu.CompilerParams(
            dimension_semantics=("parallel",),
            vmem_limit_bytes=VMEM_LIMIT),
        cost_estimate=pl.CostEstimate(flops=flops, transcendentals=M * Hp,
                                      bytes_accessed=bytes_accessed),
    )(x2, w, b)


# -----------------------------------------------------------------------------
# K2: depthwise 3x3 (BN2 scale folded) + bias + GELU, plus per-image channel
#     means (SE squeeze fused).  Grid over (batch, channel-group): channels are
#     independent, so no halo; per-step VMEM is bounded by Ho*Wo*tc.
# -----------------------------------------------------------------------------
def _dw_gelu_mean_kernel(x_ref, w_ref, b_ref, o_ref, m_ref):
    Ho, Wo = o_ref.shape[1], o_ref.shape[2]
    x = x_ref[0].astype(jnp.float32)                       # (Ho+2, Wo+2, tc), zero padded
    w = w_ref[...].astype(jnp.float32)                     # (3, 3, tc)
    acc = jnp.zeros((Ho, Wo, x.shape[-1]), jnp.float32)
    for dy in range(3):                                    # 9 unit-stride taps
        for dx in range(3):
            acc = acc + x[dy:dy + Ho, dx:dx + Wo, :] * w[dy:dy + 1, dx:dx + 1, :]
    z = _gelu(acc + b_ref[...])
    o_ref[0] = z.astype(o_ref.dtype)
    s = jnp.sum(z, axis=0, keepdims=True)                  # (1, Wo, tc)
    s = jnp.sum(s, axis=1, keepdims=True)                  # (1, 1, tc)
    m_ref[...] = s * (1.0 / (Ho * Wo))


def dw3x3_gelu_mean(h1p, w_dw, b2, *, tc=256):
    """h1p: (B, Ho+2, Wo+2, Hp) bf16 zero-padded.  Returns (h2 bf16, means f32)."""
    B, Hp2, Wp2, C = h1p.shape
    Ho, Wo = Hp2 - 2, Wp2 - 2
    tc = min(tc, C)
    ncg = C // tc
    return pl.pallas_call(
        _dw_gelu_mean_kernel,
        out_shape=(jax.ShapeDtypeStruct((B, Ho, Wo, C), jnp.bfloat16),
                   jax.ShapeDtypeStruct((B, 1, C), jnp.float32)),
        grid=(B, ncg),
        in_specs=[
            pl.BlockSpec((1, Ho + 2, Wo + 2, tc), lambda b, c: (b, 0, 0, c)),
            pl.BlockSpec((3, 3, tc), lambda b, c: (0, 0, c)),
            pl.BlockSpec((1, tc), lambda b, c: (0, c)),
        ],
        out_specs=[
            pl.BlockSpec((1, Ho, Wo, tc), lambda b, c: (b, 0, 0, c)),
            pl.BlockSpec((1, 1, tc), lambda b, c: (b, 0, c)),
        ],
        compiler_params=pltpu.CompilerParams(
            dimension_semantics=("parallel", "parallel"),
            vmem_limit_bytes=VMEM_LIMIT),
    )(h1p, w_dw, b2)


# -----------------------------------------------------------------------------
# K3: SE gate only (means -> Linear -> GELU -> Linear -> sigmoid), tiny.
# -----------------------------------------------------------------------------
def _se_gate_kernel(m_ref, w1_ref, w2_ref, o_ref):
    m = m_ref[0]                                           # (1, Hp) f32
    z = _gelu(jnp.dot(m, w1_ref[...], preferred_element_type=jnp.float32))
    g = _sigmoid(jnp.dot(z, w2_ref[...], preferred_element_type=jnp.float32))
    o_ref[0] = g.astype(o_ref.dtype)


def se_gate(means, w1, w2):
    """means: (B, 1, Hp) f32.  -> gate (B, 1, Hp) f32."""
    B, _, Hp = means.shape
    Sp = w1.shape[1]
    return pl.pallas_call(
        _se_gate_kernel,
        out_shape=jax.ShapeDtypeStruct((B, 1, Hp), jnp.float32),
        grid=(B,),
        in_specs=[
            pl.BlockSpec((1, 1, Hp), lambda b: (b, 0, 0)),
            pl.BlockSpec((Hp, Sp), lambda b: (0, 0)),
            pl.BlockSpec((Sp, Hp), lambda b: (0, 0)),
        ],
        out_specs=pl.BlockSpec((1, 1, Hp), lambda b: (b, 0, 0)),
        compiler_params=pltpu.CompilerParams(dimension_semantics=("parallel",)),
    )(means, w1, w2)


# -----------------------------------------------------------------------------
# K4: MaxPool2d(3, 2, 1) from 4 even/odd phase slabs, grid (batch, channel-group).
# -----------------------------------------------------------------------------
def _maxpool_kernel(ee_ref, eo_ref, oe_ref, oo_ref, o_ref):
    Ho, Wo = o_ref.shape[1], o_ref.shape[2]
    ee, eo, oe, oo = ee_ref[0], eo_ref[0], oe_ref[0], oo_ref[0]
    m = ee[:Ho, :Wo]
    m = jnp.maximum(m, ee[:Ho, 1:Wo + 1])
    m = jnp.maximum(m, ee[1:Ho + 1, :Wo])
    m = jnp.maximum(m, ee[1:Ho + 1, 1:Wo + 1])
    m = jnp.maximum(m, eo[:Ho, :Wo])
    m = jnp.maximum(m, eo[1:Ho + 1, :Wo])
    m = jnp.maximum(m, oe[:Ho, :Wo])
    m = jnp.maximum(m, oe[:Ho, 1:Wo + 1])
    m = jnp.maximum(m, oo[:Ho, :Wo])
    o_ref[0] = m.astype(o_ref.dtype)


def maxpool3x3s2(xq, *, tc=256):
    """xq: (B, H, W, Cp) bf16 (padded channels are zero).  -> (B, Ho, Wo, Cp) bf16."""
    B, H, W, C = xq.shape
    Ho, Wo = (H - 1) // 2 + 1, (W - 1) // 2 + 1
    pad_val = float(jnp.finfo(xq.dtype).min)
    xp = jnp.pad(xq, ((0, 0), (1, 1), (1, 1), (0, 0)), constant_values=pad_val)
    ee = xp[:, 0::2, 0::2, :][:, :Ho + 1, :Wo + 1, :]
    eo = xp[:, 0::2, 1::2, :][:, :Ho + 1, :Wo, :]
    oe = xp[:, 1::2, 0::2, :][:, :Ho, :Wo + 1, :]
    oo = xp[:, 1::2, 1::2, :][:, :Ho, :Wo, :]
    tc = min(tc, C)
    ncg = C // tc
    return pl.pallas_call(
        _maxpool_kernel,
        out_shape=jax.ShapeDtypeStruct((B, Ho, Wo, C), xq.dtype),
        grid=(B, ncg),
        in_specs=[
            pl.BlockSpec((1, Ho + 1, Wo + 1, tc), lambda b, c: (b, 0, 0, c)),
            pl.BlockSpec((1, Ho + 1, Wo, tc), lambda b, c: (b, 0, 0, c)),
            pl.BlockSpec((1, Ho, Wo + 1, tc), lambda b, c: (b, 0, 0, c)),
            pl.BlockSpec((1, Ho, Wo, tc), lambda b, c: (b, 0, 0, c)),
        ],
        out_specs=pl.BlockSpec((1, Ho, Wo, tc), lambda b, c: (b, 0, 0, c)),
        compiler_params=pltpu.CompilerParams(
            dimension_semantics=("parallel", "parallel")),
    )(ee, eo, oe, oo)


# -----------------------------------------------------------------------------
# K5: [h2*gate | pooled] @ [w3*s3 ; wproj]  (single MXU matmul, K = Hp+Cp)
#     + BN3 shift + residual add, grid (batch, row-tiles).
# -----------------------------------------------------------------------------
def _fused_out_kernel(h_ref, g_ref, p_ref, w_ref, b_ref, o_ref):
    hg = (h_ref[0].astype(jnp.float32) * g_ref[0]).astype(jnp.bfloat16)   # SE scale fused
    xcat = jnp.concatenate([hg, p_ref[0]], axis=-1)                        # lane-aligned concat
    acc = jnp.dot(xcat, w_ref[...], preferred_element_type=jnp.float32)
    o_ref[0] = (acc + b_ref[...]).astype(o_ref.dtype)


def fused_out(h2, gate, pooled, wcat, b3, *, tm=512):
    """h2:(B,R,Hp) bf16, gate:(B,1,Hp) f32, pooled:(B,R,Cp) bf16, wcat:(Hp+Cp,Op) bf16."""
    B, R, Hp = h2.shape
    Cp = pooled.shape[2]
    Op = wcat.shape[1]
    tm = _pick_tile(R, tm)
    flops = 2 * B * R * (Hp + Cp) * Op
    bytes_accessed = int(B * R * (Hp + Cp) * 2 + (Hp + Cp) * Op * 2
                         + B * Hp * 4 + B * R * Op * 4 + Op * 4)
    return pl.pallas_call(
        _fused_out_kernel,
        out_shape=jax.ShapeDtypeStruct((B, R, Op), jnp.float32),
        grid=(B, pl.cdiv(R, tm)),
        in_specs=[
            pl.BlockSpec((1, tm, Hp), lambda b, i: (b, i, 0)),
            pl.BlockSpec((1, 1, Hp), lambda b, i: (b, 0, 0)),
            pl.BlockSpec((1, tm, Cp), lambda b, i: (b, i, 0)),
            pl.BlockSpec((Hp + Cp, Op), lambda b, i: (0, 0)),
            pl.BlockSpec((1, Op), lambda b, i: (0, 0)),
        ],
        out_specs=pl.BlockSpec((1, tm, Op), lambda b, i: (b, i, 0)),
        compiler_params=pltpu.CompilerParams(
            dimension_semantics=("parallel", "parallel"),
            vmem_limit_bytes=VMEM_LIMIT),
        cost_estimate=pl.CostEstimate(flops=flops, transcendentals=0,
                                      bytes_accessed=bytes_accessed),
    )(h2, gate, pooled, wcat, b3)


# -----------------------------------------------------------------------------
# Full MBConv (downsample=True) forward.
# -----------------------------------------------------------------------------
def mbconv_downsample_forward(x_nchw, params, *, tm=512):
    """MBConv.forward (downsample=True): proj(maxpool(x)) + conv(x).  x: (B, Cin, H, W)."""
    B, cin, H, W = x_nchw.shape
    P = _fold_params(params)
    Cp, Hp, Op, oup = P["Cp"], P["Hp"], P["Op"], P["oup"]

    # NHWC, lane-pad channels to Cp, bf16 activations.
    x = jnp.transpose(x_nchw, (0, 2, 3, 1)).astype(jnp.float32)
    xq = jnp.pad(x, ((0, 0), (0, 0), (0, 0), (0, Cp - cin))).astype(jnp.bfloat16)

    Ho, Wo = (H - 1) // 2 + 1, (W - 1) // 2 + 1
    M = B * Ho * Wo

    # conv path: folded BN0 + 1x1/s2 conv + folded BN1 + GELU (K1).
    xs2 = xq[:, ::2, ::2, :].reshape(M, Cp)        # stride-2 sampling commutes with 1x1 conv
    h1 = pw_gelu(xs2, P["w1"], P["b1"], tm=tm)                                  # (M, Hp) bf16

    # depthwise 3x3 + folded BN2 + GELU + SE squeeze (K2).
    h1p = jnp.pad(h1.reshape(B, Ho, Wo, Hp), ((0, 0), (1, 1), (1, 1), (0, 0)))  # bf16
    h2, means = dw3x3_gelu_mean(h1p, P["wdw"], P["b2"])            # (B,Ho,Wo,Hp), (B,1,Hp)

    # SE excitation (K3): gate only, scale is applied inside K5.
    gate = se_gate(means, P["wse1"], P["wse2"])                                 # (B,1,Hp) f32

    # proj branch: MaxPool2d(3, 2, 1) (K4).
    pooled = maxpool3x3s2(xq)                                                   # (B,Ho,Wo,Cp)

    # fused output: [h2*gate | pooled] @ [w3*s3 ; wproj] + b3 (K5).
    out = fused_out(h2.reshape(B, Ho * Wo, Hp), gate,
                    pooled.reshape(B, Ho * Wo, Cp), P["wcat"], P["b3"], tm=tm)

    out = out.reshape(B, Ho, Wo, Op)[..., :oup]
    return jnp.transpose(out, (0, 3, 1, 2))


# -----------------------------------------------------------------------------
# Pure-JAX reference (uses the SAME folded/padded/quantized weights and mirrors
# the bf16 rounding points of the kernel pipeline).
# -----------------------------------------------------------------------------
def mbconv_reference(x_nchw, params):
    P = _fold_params(params)
    cin, oup, Cp, Hp = P["cin"], P["oup"], P["Cp"], P["Hp"]
    r = lambda a: a.astype(jnp.bfloat16).astype(jnp.float32)

    x = jnp.transpose(x_nchw, (0, 2, 3, 1)).astype(jnp.float32)
    xq = r(jnp.pad(x, ((0, 0), (0, 0), (0, 0), (0, Cp - cin))))

    w1 = P["w1"].astype(jnp.float32)
    wcat = P["wcat"].astype(jnp.float32)

    # conv path
    xs = xq[:, ::2, ::2, :]
    h1 = r(_gelu(xs @ w1 + P["b1"]))
    w_hwio = P["wdw"][:, :, None, :]                       # (3,3,1,Hp)
    dw = lax.conv_general_dilated(h1, w_hwio, (1, 1), ((1, 1), (1, 1)),
                                  feature_group_count=Hp,
                                  dimension_numbers=("NHWC", "HWIO", "NHWC"))
    h2f = _gelu(dw + P["b2"])
    h2 = r(h2f)
    means = jnp.mean(h2f, axis=(1, 2))                     # squeeze on f32, like the kernel
    gate = _sigmoid(_gelu(means @ P["wse1"]) @ P["wse2"])  # (B, Hp)
    hg = r(h2 * gate[:, None, None, :])

    # proj path
    pooled = lax.reduce_window(xq, -jnp.inf, lax.max, (1, 3, 3, 1), (1, 2, 2, 1),
                               ((0, 0), (1, 1), (1, 1), (0, 0)))
    pooled = r(pooled)

    out = jnp.concatenate([hg, pooled], axis=-1) @ wcat + P["b3"]
    out = out[..., :oup]
    return jnp.transpose(out, (0, 3, 1, 2))


if __name__ == "__main__":
    # TODO(synk): only the downsample=True branch of MBConv.forward is implemented; the
    # downsample=False branch (ConvTranspose2d path, needs a second input xt) is not.
    key = jax.random.PRNGKey(0)
    B, Cin, H, W = 2, 8, 16, 16
    oup = 16
    hidden = Cin * 3
    se_dim = int(Cin * 0.25)

    ks = jax.random.split(key, 12)
    x = jax.random.normal(ks[0], (B, Cin, H, W), jnp.float32)

    params = {
        "conv1_w": jax.random.normal(ks[1], (hidden, Cin, 1, 1), jnp.float32) / jnp.sqrt(Cin),
        "dw_w": jax.random.normal(ks[2], (hidden, 1, 3, 3), jnp.float32) / 3.0,
        "conv3_w": jax.random.normal(ks[3], (oup, hidden, 1, 1), jnp.float32) / jnp.sqrt(hidden),
        "proj_w": jax.random.normal(ks[4], (oup, Cin, 1, 1), jnp.float32) / jnp.sqrt(Cin),
        "se_fc1_w": jax.random.normal(ks[5], (se_dim, hidden), jnp.float32) / jnp.sqrt(hidden),
        "se_fc2_w": jax.random.normal(ks[6], (hidden, se_dim), jnp.float32) / jnp.sqrt(se_dim),
    }
    for i, (name, c) in enumerate([("bn0", Cin), ("bn1", hidden), ("bn2", hidden), ("bn3", oup)]):
        kk = jax.random.split(ks[7 + i], 4)
        params[f"{name}_gamma"] = jax.random.uniform(kk[0], (c,), jnp.float32, 0.5, 1.5)
        params[f"{name}_beta"] = jax.random.normal(kk[1], (c,), jnp.float32) * 0.1
        params[f"{name}_mean"] = jax.random.normal(kk[2], (c,), jnp.float32) * 0.1
        params[f"{name}_var"] = jax.random.uniform(kk[3], (c,), jnp.float32, 0.5, 1.5)

    out = mbconv_downsample_forward(x, params)
    out = jax.block_until_ready(out)

    ref = mbconv_reference(x, params)
    assert out.shape == (B, oup, H // 2, W // 2), out.shape
    assert jnp.allclose(out, ref, atol=5e-2, rtol=5e-2), (
        f"mismatch vs reference, max abs err {jnp.max(jnp.abs(out - ref))}")

    print("KERNEL_OK")
</pallas_src>

<mosaic_0001>
module attributes {stable_mosaic.version = 11 : i64} {
  func.func @_pw_gelu_kernel(%arg0: i32, %arg1: memref<128x128xbf16, #tpu.memory_space<vmem>>, %arg2: memref<128x128xbf16, #tpu.memory_space<vmem>>, %arg3: memref<1x128xf32, #tpu.memory_space<vmem>>, %arg4: memref<128x128xbf16, #tpu.memory_space<vmem>>) attributes {dimension_semantics = [#tpu.dimension_semantics<parallel>], iteration_bounds = array<i64: 1>, scalar_prefetch = 0 : i64, scratch_operands = 0 : i64, tpu.core_type = #tpu.core_type<tc>, window_params = [{transform_indices = @transform_0, window_bounds = array<i64: 128, 128>}, {pipeline_mode = #tpu.pipeline_mode<synchronous>, transform_indices = @transform_1, window_bounds = array<i64: 128, 128>}, {pipeline_mode = #tpu.pipeline_mode<synchronous>, transform_indices = @transform_2, window_bounds = array<i64: 1, 128>}, {transform_indices = @transform_3, window_bounds = array<i64: 128, 128>}]} {
    %c0 = arith.constant 0 : index
    %c0_0 = arith.constant 0 : index
    %0 = vector.load %arg1[%c0, %c0_0] : memref<128x128xbf16, #tpu.memory_space<vmem>>, vector<128x128xbf16>
    %c0_1 = arith.constant 0 : index
    %c0_2 = arith.constant 0 : index
    %1 = vector.load %arg2[%c0_1, %c0_2] : memref<128x128xbf16, #tpu.memory_space<vmem>>, vector<128x128xbf16>
    %cst = arith.constant dense<0.000000e+00> : vector<128x128xf32>
    %2 = tpu.matmul %0, %1, %cst {dimension_numbers = #tpu.dot_dimension_numbers<[1], [0], [0], [1], [0, 0, 1, 1], [], []>} : vector<128x128xbf16>, vector<128x128xbf16>, vector<128x128xf32> -> vector<128x128xf32>
    %c0_3 = arith.constant 0 : index
    %c0_4 = arith.constant 0 : index
    %3 = vector.load %arg3[%c0_3, %c0_4] : memref<1x128xf32, #tpu.memory_space<vmem>>, vector<1x128xf32>
    %4 = vector.broadcast %3 : vector<1x128xf32> to vector<128x128xf32>
    %5 = arith.addf %2, %4 : vector<128x128xf32>
    %cst_5 = arith.constant 5.000000e-01 : f32
    %6 = vector.broadcast %cst_5 : f32 to vector<128x128xf32>
    %7 = arith.mulf %6, %5 : vector<128x128xf32>
    %cst_6 = arith.constant 4.471500e-02 : f32
    %8 = vector.broadcast %cst_6 : f32 to vector<128x128xf32>
    %9 = arith.mulf %8, %5 : vector<128x128xf32>
    %10 = arith.mulf %9, %5 : vector<128x128xf32>
    %11 = arith.mulf %10, %5 : vector<128x128xf32>
    %12 = arith.addf %5, %11 : vector<128x128xf32>
    %cst_7 = arith.constant 0.797884583 : f32
    %13 = vector.broadcast %cst_7 : f32 to vector<128x128xf32>
    %14 = arith.mulf %13, %12 : vector<128x128xf32>
    %15 = math.tanh %14 : vector<128x128xf32>
    %cst_8 = arith.constant 1.000000e+00 : f32
    %16 = vector.broadcast %cst_8 : f32 to vector<128x128xf32>
    %17 = arith.addf %16, %15 : vector<128x128xf32>
    %18 = arith.mulf %7, %17 : vector<128x128xf32>
    %19 = arith.truncf %18 : vector<128x128xf32> to vector<128x128xbf16>
    %c0_9 = arith.constant 0 : index
    %c0_10 = arith.constant 0 : index
    %20 = vector.load %arg4[%c0_9, %c0_10] : memref<128x128xbf16, #tpu.memory_space<vmem>>, vector<128x128xbf16>
    tpu.vector_store %arg4[%c0_9, %c0_10], %19 {strides = array<i32>} : memref<128x128xbf16, #tpu.memory_space<vmem>>, vector<128x128xbf16>,
    return
  }
  func.func @transform_0(%arg0: i32) -> (i32, i32) {
    %c0_i32 = arith.constant 0 : i32
    %c0_i32_0 = arith.constant 0 : i32
    return %arg0, %c0_i32 : i32, i32
  }
  func.func @transform_1(%arg0: i32) -> (i32, i32) {
    %c0_i32 = arith.constant 0 : i32
    %c0_i32_0 = arith.constant 0 : i32
    %c0_i32_1 = arith.constant 0 : i32
    return %c0_i32, %c0_i32_0 : i32, i32
  }
  func.func @transform_2(%arg0: i32) -> (i32, i32) {
    %c0_i32 = arith.constant 0 : i32
    %c0_i32_0 = arith.constant 0 : i32
    %c0_i32_1 = arith.constant 0 : i32
    return %c0_i32, %c0_i32_0 : i32, i32
  }
  func.func @transform_3(%arg0: i32) -> (i32, i32) {
    %c0_i32 = arith.constant 0 : i32
    %c0_i32_0 = arith.constant 0 : i32
    return %arg0, %c0_i32 : i32, i32
  }
}

</mosaic_0001>

<llo_original>
// kernel: tpu_custom_call.1
$region0: #{tpu_custom_call.1}
  #allocation0 [shape = 'u32[]', space=smem, size = 0x4, offset = 0x4, fixed_abs, tag = 'smem constant byte address 0x4 - core index']
  #allocation1 [shape = 'u32[72,128]{1,0:T(1,128)}', space=vmem, size = 0x9000, scoped, tag = 'internal scratch']
  %s0 = inlined_call_operand.hbm [shape: bf16[128,128], index: 0, kind: input, shape index: {}]
  %s1 = inlined_call_operand.hbm [shape: bf16[128,128], index: 1, kind: input, shape index: {}]
  %s2 = inlined_call_operand.vmem [shape: f32[1,128], index: 2, kind: input, shape index: {}]
  %s3 = inlined_call_operand.hbm [shape: bf16[128,128], index: 3, kind: output, shape index: {}]
  %s4 = sld [smem:[#allocation0]]
  $region30: #{tpu_custom_call.1} parent=0
    _
  %s6 = ssub.s32 1, %s4
  %s7 = scalar_select 0, %s6, %s4
  $region1: #{tpu_custom_call.1} parent=0
    #allocation2 [shape = 'u8[32768]{0}', space=vmem, size = 0x8000, scoped, tag = 'input window, operand 0, single buffered']
    #allocation3 [shape = 's32[1]{0}', space=sflag, size = 0x4, scoped, tag = 'scoped memory for tpu_custom_call.1']
    #allocation4 [shape = 's32[1]{0}', space=sflag, size = 0x4, scoped, tag = 'scoped memory for tpu_custom_call.1']
    #allocation5 [shape = 'u8[32768]{0}', space=vmem, size = 0x8000, scoped, tag = 'input window, operand 1, single buffered']
    #allocation6 [shape = 's32[1]{0}', space=sflag, size = 0x4, scoped, tag = 'scoped memory for tpu_custom_call.1']
    #allocation7 [shape = 'u8[32768]{0}', space=vmem, size = 0x8000, scoped, tag = 'output window, operand 0, single buffered']
    %8 = vsyncpa [#allocation3], 0
    %9 = vsyncpa [#allocation6], 0
    %10 = vsyncpa [#allocation4], 0
    // Predicated region
    $region2: #{tpu_custom_call.1} parent=1 // pred_check
      _
    $region3: #{tpu_custom_call.1} parent=1 // pred_check_branch
      %12 = sbr.rel (0) target = $region5
    $region4: #{tpu_custom_call.1} parent=1 // pred_region
      %14 = vsyncadd [#allocation3], 0
      %s15 = sshll.u32 %s0, 4
      %s16 = int_to_ptr.hbm [resolvable:$true] %s15
      %s17 = sshll.u32 [#allocation2], 4
      %s18 = int_to_ptr.vmem [resolvable:$true] %s17
      %23 = dma.hbm_to_vmem [thread:$0]  %s16, 1024, %s18, [#allocation3], 64, 64, 4
    $region5: #{tpu_custom_call.1} parent=1 // pred_fallthru
      _
    // Predicated region
    $region6: #{tpu_custom_call.1} parent=1 // pred_check
      _
    $region7: #{tpu_custom_call.1} parent=1 // pred_check_branch
      %25 = sbr.rel (0) target = $region9
    $region8: #{tpu_custom_call.1} parent=1 // pred_region
      %27 = vsyncadd [#allocation6], 0
      %s28 = sshll.u32 %s1, 4
      %s29 = int_to_ptr.hbm [resolvable:$true] %s28
      %s30 = sshll.u32 [#allocation5], 4
      %s31 = int_to_ptr.vmem [resolvable:$true] %s30
      %36 = dma.hbm_to_vmem [thread:$0]  %s29, 1024, %s31, [#allocation6], 64, 64, 4
    $region9: #{tpu_custom_call.1} parent=1 // pred_fallthru
      _
    // Predicated region
    $region10: #{tpu_custom_call.1} parent=1 // pred_check
      _
    $region11: #{tpu_custom_call.1} parent=1 // pred_check_branch
      %38 = sbr.rel (0) target = $region13
    $region12: #{tpu_custom_call.1} parent=1 // pred_region
      _
    $region13: #{tpu_custom_call.1} parent=1 // pred_fallthru
      _
    // Predicated region
    $region14: #{tpu_custom_call.1} parent=1 // pred_check
      _
    $region15: #{tpu_custom_call.1} parent=1 // pred_check_branch
      %40 = sbr.rel (0) target = $region17
    $region16: #{tpu_custom_call.1} parent=1 // pred_region
      %42 = dma.done [#allocation3], 1024
    $region17: #{tpu_custom_call.1} parent=1 // pred_fallthru
      _
    // Predicated region
    $region18: #{tpu_custom_call.1} parent=1 // pred_check
      _
    $region19: #{tpu_custom_call.1} parent=1 // pred_check_branch
      %44 = sbr.rel (0) target = $region21
    $region20: #{tpu_custom_call.1} parent=1 // pred_region
      %46 = dma.done [#allocation6], 1024
    $region21: #{tpu_custom_call.1} parent=1 // pred_fallthru
      _
    %v47 = vld [vmem:[#allocation2] sm:$0xf]
    %v48 = vld [vmem:[#allocation2 + $0x4] sm:$0xf]
    %v49 = vld [vmem:[#allocation2 + $0x8] sm:$0xf]
    %v50 = vld [vmem:[#allocation2 + $0xc] sm:$0xf]
    %v51 = vld [vmem:[#allocation2 + $0x10] sm:$0xf]
    %v52 = vld [vmem:[#allocation2 + $0x14] sm:$0xf]
    %v53 = vld [vmem:[#allocation2 + $0x18] sm:$0xf]
    %v54 = vld [vmem:[#allocation2 + $0x1c] sm:$0xf]
    %v55 = vld [vmem:[#allocation2 + $0x20] sm:$0xf]
    %v56 = vld [vmem:[#allocation2 + $0x24] sm:$0xf]
    %v57 = vld [vmem:[#allocation2 + $0x28] sm:$0xf]
    %v58 = vld [vmem:[#allocation2 + $0x2c] sm:$0xf]
    %v59 = vld [vmem:[#allocation2 + $0x30] sm:$0xf]
    %v60 = vld [vmem:[#allocation2 + $0x34] sm:$0xf]
    %v61 = vld [vmem:[#allocation2 + $0x38] sm:$0xf]
    %v62 = vld [vmem:[#allocation2 + $0x3c] sm:$0xf]
    %v63 = vld [vmem:[#allocation5] sm:$0xf]
    %v64 = vld [vmem:[#allocation5 + $0x4] sm:$0xf]
    %v65 = vld [vmem:[#allocation5 + $0x8] sm:$0xf]
    %v66 = vld [vmem:[#allocation5 + $0xc] sm:$0xf]
    %v67 = vld [vmem:[#allocation5 + $0x10] sm:$0xf]
    %v68 = vld [vmem:[#allocation5 + $0x14] sm:$0xf]
    %v69 = vld [vmem:[#allocation5 + $0x18] sm:$0xf]
    %v70 = vld [vmem:[#allocation5 + $0x1c] sm:$0xf]
    %v71 = vld [vmem:[#allocation5 + $0x20] sm:$0xf]
    %v72 = vld [vmem:[#allocation5 + $0x24] sm:$0xf]
    %v73 = vld [vmem:[#allocation5 + $0x28] sm:$0xf]
    %v74 = vld [vmem:[#allocation5 + $0x2c] sm:$0xf]
    %v75 = vld [vmem:[#allocation5 + $0x30] sm:$0xf]
    %v76 = vld [vmem:[#allocation5 + $0x34] sm:$0xf]
    %v77 = vld [vmem:[#allocation5 + $0x38] sm:$0xf]
    %v78 = vld [vmem:[#allocation5 + $0x3c] sm:$0xf]
    %v79 = vld [vmem:[%s2] sm:$0x1]
    %v81 = vperm.slane %v79, 0
    %v99 = vunpack.c.l.b16 %v47
    %v100 = vunpack.c.l.b16 %v48
    %v101 = vunpack.c.l.b16 %v49
    %v102 = vunpack.c.l.b16 %v50
    %v103 = vunpack.c.l.b16 %v51
    %v104 = vunpack.c.l.b16 %v52
    %v105 = vunpack.c.l.b16 %v53
    %v106 = vunpack.c.l.b16 %v54
    %v107 = vunpack.c.l.b16 %v55
    %v108 = vunpack.c.l.b16 %v56
    %v109 = vunpack.c.l.b16 %v57
    %v110 = vunpack.c.l.b16 %v58
    %v111 = vunpack.c.l.b16 %v59
    %v112 = vunpack.c.l.b16 %v60
    %v113 = vunpack.c.l.b16 %v61
    %v114 = vunpack.c.l.b16 %v62
    %v115 = vpack.c.b16 %v100, %v99
    %v116 = vpack.c.b16 %v102, %v101
    %v117 = vpack.c.b16 %v104, %v103
    %v118 = vpack.c.b16 %v106, %v105
    %v119 = vpack.c.b16 %v108, %v107
    %v120 = vpack.c.b16 %v110, %v109
    %v121 = vpack.c.b16 %v112, %v111
    %v122 = vpack.c.b16 %v114, %v113
    %v147 = vunpack.c.l.b16 %v63
    %v148 = vunpack.c.l.b16 %v64
    %v149 = vunpack.c.l.b16 %v65
    %v150 = vunpack.c.l.b16 %v66
    %v151 = vunpack.c.l.b16 %v67
    %v152 = vunpack.c.l.b16 %v68
    %v153 = vunpack.c.l.b16 %v69
    %v154 = vunpack.c.l.b16 %v70
    %v155 = vunpack.c.l.b16 %v71
    %v156 = vunpack.c.l.b16 %v72
    %v157 = vunpack.c.l.b16 %v73
    %v158 = vunpack.c.l.b16 %v74
    %v159 = vunpack.c.l.b16 %v75
    %v160 = vunpack.c.l.b16 %v76
    %v161 = vunpack.c.l.b16 %v77
    %v162 = vunpack.c.l.b16 %v78
    %v163 = vpack.c.b16 %v148, %v147
    %v164 = vpack.c.b16 %v150, %v149
    %v165 = vpack.c.b16 %v152, %v151
    %v166 = vpack.c.b16 %v154, %v153
    %v167 = vpack.c.b16 %v156, %v155
    %v168 = vpack.c.b16 %v158, %v157
    %v169 = vpack.c.b16 %v160, %v159
    %v170 = vpack.c.b16 %v162, %v161
    %179 = vmatpush.bf16.msra.mxu0 %v170
    %180 = vmatpush.bf16.msra.mxu0 %v169
    %181 = vmatpush.bf16.msra.mxu0 %v168
    %182 = vmatpush.bf16.msra.mxu0 %v167
    %183 = vmatpush.bf16.msra.mxu0 %v166
    %184 = vmatpush.bf16.msra.mxu0 %v165
    %185 = vmatpush.bf16.msra.mxu0 %v164
    %186 = vmatpush.bf16.msra.mxu0 %v163
    %187 = vmatmul.bf16.gmra.mxu0 %v115
    %v188 = vpop.f32.mrf.mxu0
    %v189 = vadd.f32 %v81, %v188
    %v190 = vpop.f32.mrf.mxu0
    %v191 = vadd.f32 %v81, %v190
    %192 = vmatmul.bf16.gmra.mxu0 %v116
    %v193 = vpop.f32.mrf.mxu0
    %v194 = vadd.f32 %v81, %v193
    %v195 = vpop.f32.mrf.mxu0
    %v196 = vadd.f32 %v81, %v195
    %197 = vmatmul.bf16.gmra.mxu0 %v117
    %v198 = vpop.f32.mrf.mxu0
    %v199 = vadd.f32 %v81, %v198
    %v200 = vpop.f32.mrf.mxu0
    %v201 = vadd.f32 %v81, %v200
    %202 = vmatmul.bf16.gmra.mxu0 %v118
    %v203 = vpop.f32.mrf.mxu0
    %v204 = vadd.f32 %v81, %v203
    %v205 = vpop.f32.mrf.mxu0
    %v206 = vadd.f32 %v81, %v205
    %207 = vmatmul.bf16.gmra.mxu0 %v119
    %v208 = vpop.f32.mrf.mxu0
    %v209 = vadd.f32 %v81, %v208
    %v210 = vpop.f32.mrf.mxu0
    %v211 = vadd.f32 %v81, %v210
    %212 = vmatmul.bf16.gmra.mxu0 %v120
    %v213 = vpop.f32.mrf.mxu0
    %v214 = vadd.f32 %v81, %v213
    %v215 = vpop.f32.mrf.mxu0
    %v216 = vadd.f32 %v81, %v215
    %217 = vmatmul.bf16.gmra.mxu0 %v121
    %v218 = vpop.f32.mrf.mxu0
    %v219 = vadd.f32 %v81, %v218
    %v220 = vpop.f32.mrf.mxu0
    %v221 = vadd.f32 %v81, %v220
    %222 = vmatmul.bf16.gmra.mxu0 %v122
    %v223 = vpop.f32.mrf.mxu0
    %v224 = vadd.f32 %v81, %v223
    %v225 = vpop.f32.mrf.mxu0
    %v226 = vadd.f32 %v81, %v225
    %227 = vdwg.mxu0
    %v228 = vmul.f32 %v189, 0.5
    %v229 = vmul.f32 %v191, 0.5
    %v230 = vmul.f32 %v194, 0.5
    %v231 = vmul.f32 %v196, 0.5
    %v232 = vmul.f32 %v199, 0.5
    %v233 = vmul.f32 %v201, 0.5
    %v234 = vmul.f32 %v204, 0.5
    %v235 = vmul.f32 %v206, 0.5
    %v236 = vmul.f32 %v209, 0.5
    %v237 = vmul.f32 %v211, 0.5
    %v238 = vmul.f32 %v214, 0.5
    %v239 = vmul.f32 %v216, 0.5
    %v240 = vmul.f32 %v219, 0.5
    %v241 = vmul.f32 %v221, 0.5
    %v242 = vmul.f32 %v224, 0.5
    %v243 = vmul.f32 %v226, 0.5
    %v244 = vmul.f32 %v189, 0.044715
    %v245 = vmul.f32 %v191, 0.044715
    %v246 = vmul.f32 %v194, 0.044715
    %v247 = vmul.f32 %v196, 0.044715
    %v248 = vmul.f32 %v199, 0.044715
    %v249 = vmul.f32 %v201, 0.044715
    %v250 = vmul.f32 %v204, 0.044715
    %v251 = vmul.f32 %v206, 0.044715
    %v252 = vmul.f32 %v209, 0.044715
    %v253 = vmul.f32 %v211, 0.044715
    %v254 = vmul.f32 %v214, 0.044715
    %v255 = vmul.f32 %v216, 0.044715
    %v256 = vmul.f32 %v219, 0.044715
    %v257 = vmul.f32 %v221, 0.044715
    %v258 = vmul.f32 %v224, 0.044715
    %v259 = vmul.f32 %v226, 0.044715
    %v260 = vmul.f32 %v244, %v189
    %v261 = vmul.f32 %v245, %v191
    %v262 = vmul.f32 %v246, %v194
    %v263 = vmul.f32 %v247, %v196
    %v264 = vmul.f32 %v248, %v199
    %v265 = vmul.f32 %v249, %v201
    %v266 = vmul.f32 %v250, %v204
    %v267 = vmul.f32 %v251, %v206
    %v268 = vmul.f32 %v252, %v209
    %v269 = vmul.f32 %v253, %v211
    %v270 = vmul.f32 %v254, %v214
    %v271 = vmul.f32 %v255, %v216
    %v272 = vmul.f32 %v256, %v219
    %v273 = vmul.f32 %v257, %v221
    %v274 = vmul.f32 %v258, %v224
    %v275 = vmul.f32 %v259, %v226
    %v276 = vmul.f32 %v260, %v189
    %v277 = vmul.f32 %v261, %v191
    %v278 = vmul.f32 %v262, %v194
    %v279 = vmul.f32 %v263, %v196
    %v280 = vmul.f32 %v264, %v199
    %v281 = vmul.f32 %v265, %v201
    %v282 = vmul.f32 %v266, %v204
    %v283 = vmul.f32 %v267, %v206
    %v284 = vmul.f32 %v268, %v209
    %v285 = vmul.f32 %v269, %v211
    %v286 = vmul.f32 %v270, %v214
    %v287 = vmul.f32 %v271, %v216
    %v288 = vmul.f32 %v272, %v219
    %v289 = vmul.f32 %v273, %v221
    %v290 = vmul.f32 %v274, %v224
    %v291 = vmul.f32 %v275, %v226
    %v292 = vadd.f32 %v189, %v276
    %v293 = vadd.f32 %v191, %v277
    %v294 = vadd.f32 %v194, %v278
    %v295 = vadd.f32 %v196, %v279
    %v296 = vadd.f32 %v199, %v280
    %v297 = vadd.f32 %v201, %v281
    %v298 = vadd.f32 %v204, %v282
    %v299 = vadd.f32 %v206, %v283
    %v300 = vadd.f32 %v209, %v284
    %v301 = vadd.f32 %v211, %v285
    %v302 = vadd.f32 %v214, %v286
    %v303 = vadd.f32 %v216, %v287
    %v304 = vadd.f32 %v219, %v288
    %v305 = vadd.f32 %v221, %v289
    %v306 = vadd.f32 %v224, %v290
    %v307 = vadd.f32 %v226, %v291
    %v308 = vmul.f32 %v292, 0.7978846
    %v309 = vmul.f32 %v293, 0.7978846
    %v310 = vmul.f32 %v294, 0.7978846
    %v311 = vmul.f32 %v295, 0.7978846
    %v312 = vmul.f32 %v296, 0.7978846
    %v313 = vmul.f32 %v297, 0.7978846
    %v314 = vmul.f32 %v298, 0.7978846
    %v315 = vmul.f32 %v299, 0.7978846
    %v316 = vmul.f32 %v300, 0.7978846
    %v317 = vmul.f32 %v301, 0.7978846
    %v318 = vmul.f32 %v302, 0.7978846
    %v319 = vmul.f32 %v303, 0.7978846
    %v320 = vmul.f32 %v304, 0.7978846
    %v321 = vmul.f32 %v305, 0.7978846
    %v322 = vmul.f32 %v306, 0.7978846
    %v323 = vmul.f32 %v307, 0.7978846
    %v324 = vtanh.pop %v308
    %v325 = vtanh.pop %v309
    %v326 = vtanh.pop %v310
    %v327 = vtanh.pop %v311
    %v328 = vtanh.pop %v312
    %v329 = vtanh.pop %v313
    %v330 = vtanh.pop %v314
    %v331 = vtanh.pop %v315
    %v332 = vtanh.pop %v316
    %v333 = vtanh.pop %v317
    %v334 = vtanh.pop %v318
    %v335 = vtanh.pop %v319
    %v336 = vtanh.pop %v320
    %v337 = vtanh.pop %v321
    %v338 = vtanh.pop %v322
    %v339 = vtanh.pop %v323
    %v340 = vadd.f32 %v324, 1.0
    %v341 = vadd.f32 %v325, 1.0
    %v342 = vadd.f32 %v326, 1.0
    %v343 = vadd.f32 %v327, 1.0
    %v344 = vadd.f32 %v328, 1.0
    %v345 = vadd.f32 %v329, 1.0
    %v346 = vadd.f32 %v330, 1.0
    %v347 = vadd.f32 %v331, 1.0
    %v348 = vadd.f32 %v332, 1.0
    %v349 = vadd.f32 %v333, 1.0
    %v350 = vadd.f32 %v334, 1.0
    %v351 = vadd.f32 %v335, 1.0
    %v352 = vadd.f32 %v336, 1.0
    %v353 = vadd.f32 %v337, 1.0
    %v354 = vadd.f32 %v338, 1.0
    %v355 = vadd.f32 %v339, 1.0
    %v356 = vmul.f32 %v228, %v340
    %v357 = vmul.f32 %v229, %v341
    %v358 = vmul.f32 %v230, %v342
    %v359 = vmul.f32 %v231, %v343
    %v360 = vmul.f32 %v232, %v344
    %v361 = vmul.f32 %v233, %v345
    %v362 = vmul.f32 %v234, %v346
    %v363 = vmul.f32 %v235, %v347
    %v364 = vmul.f32 %v236, %v348
    %v365 = vmul.f32 %v237, %v349
    %v366 = vmul.f32 %v238, %v350
    %v367 = vmul.f32 %v239, %v351
    %v368 = vmul.f32 %v240, %v352
    %v369 = vmul.f32 %v241, %v353
    %v370 = vmul.f32 %v242, %v354
    %v371 = vmul.f32 %v243, %v355
    %v372 = vpack.c.bf16 %v356, %v356
    %v373 = vpack.c.bf16 %v357, %v357
    %v374 = vpack.c.bf16 %v358, %v358
    %v375 = vpack.c.bf16 %v359, %v359
    %v376 = vpack.c.bf16 %v360, %v360
    %v377 = vpack.c.bf16 %v361, %v361
    %v378 = vpack.c.bf16 %v362, %v362
    %v379 = vpack.c.bf16 %v363, %v363
    %v380 = vpack.c.bf16 %v364, %v364
    %v381 = vpack.c.bf16 %v365, %v365
    %v382 = vpack.c.bf16 %v366, %v366
    %v383 = vpack.c.bf16 %v367, %v367
    %v384 = vpack.c.bf16 %v368, %v368
    %v385 = vpack.c.bf16 %v369, %v369
    %v386 = vpack.c.bf16 %v370, %v370
    %v387 = vpack.c.bf16 %v371, %v371
    %388 = vst [vmem:[#allocation7] sm:$0xf] %v372
    %389 = vst [vmem:[#allocation7 + $0x4] sm:$0xf] %v373
    %390 = vst [vmem:[#allocation7 + $0x8] sm:$0xf] %v374
    %391 = vst [vmem:[#allocation7 + $0xc] sm:$0xf] %v375
    %392 = vst [vmem:[#allocation7 + $0x10] sm:$0xf] %v376
    %393 = vst [vmem:[#allocation7 + $0x14] sm:$0xf] %v377
    %394 = vst [vmem:[#allocation7 + $0x18] sm:$0xf] %v378
    %395 = vst [vmem:[#allocation7 + $0x1c] sm:$0xf] %v379
    %396 = vst [vmem:[#allocation7 + $0x20] sm:$0xf] %v380
    %397 = vst [vmem:[#allocation7 + $0x24] sm:$0xf] %v381
    %398 = vst [vmem:[#allocation7 + $0x28] sm:$0xf] %v382
    %399 = vst [vmem:[#allocation7 + $0x2c] sm:$0xf] %v383
    %400 = vst [vmem:[#allocation7 + $0x30] sm:$0xf] %v384
    %401 = vst [vmem:[#allocation7 + $0x34] sm:$0xf] %v385
    %402 = vst [vmem:[#allocation7 + $0x38] sm:$0xf] %v386
    %403 = vst [vmem:[#allocation7 + $0x3c] sm:$0xf] %v387
    // Predicated region
    $region22: #{tpu_custom_call.1} parent=1 // pred_check
      _
    $region23: #{tpu_custom_call.1} parent=1 // pred_check_branch
      %405 = sbr.rel (0) target = $region25
    $region24: #{tpu_custom_call.1} parent=1 // pred_region
      %407 = vsyncadd [#allocation4], 0
      %s408 = sshll.u32 [#allocation7], 4
      %s409 = int_to_ptr.vmem [resolvable:$true] %s408
      %s410 = sshll.u32 %s3, 4
      %s411 = int_to_ptr.hbm [resolvable:$true] %s410
      %416 = dma.vmem_to_hbm [thread:$0]  %s409, 1024, %s411, [#allocation4], 64, 64, 4
    $region25: #{tpu_custom_call.1} parent=1 // pred_fallthru
      _
    // Predicated region
    $region26: #{tpu_custom_call.1} parent=1 // pred_check
      _
    $region27: #{tpu_custom_call.1} parent=1 // pred_check_branch
      %418 = sbr.rel (0) target = $region29
    $region28: #{tpu_custom_call.1} parent=1 // pred_region
      %420 = dma.done [#allocation4], 1024
    $region29: #{tpu_custom_call.1} parent=1 // pred_fallthru
      _
    %421 = vsyncpa [#allocation3], 1
    %422 = vsyncpa [#allocation6], 1
    %423 = vsyncpa [#allocation4], 1

</llo_original>
